<compile_context>
chip_gen: v6e
topology: v6e:2x2x1
jax: 0.10.0
libtpu: 0.0.40
codegen_flags: <defaults>
</compile_context>

<pallas_src>
import jax
import jax.numpy as jnp
from jax.experimental import pallas as pl
from jax.experimental.pallas import tpu as pltpu

IN_STATES = 6
H1 = 32
H2 = 32
H3 = 32
OUT_ACTIONS = 3

IN_PAD = 8     # input feature padding (sublane-sized, contraction dim of fc1)
HPAD = 128     # hidden feature padding (lane-dense intermediates)
OUT_PAD = 8    # output feature padding (narrow slab, masked store)


def dqn_kernel(x_ref,
               w1_ref, b1_ref,
               w2_ref, b2_ref,
               w3_ref, b3_ref,
               w4_ref, b4_ref,
               o_ref):
    x = x_ref[...]  # (TB, 8) f32

    # fc1 + ReLU  ->  (TB, 128) lane-dense
    h = jnp.dot(x, w1_ref[...], preferred_element_type=jnp.float32) + b1_ref[...]
    h = jnp.maximum(h, 0.0)

    # fc2 + ReLU
    h = jnp.dot(h, w2_ref[...], preferred_element_type=jnp.float32) + b2_ref[...]
    h = jnp.maximum(h, 0.0)

    # fc3 + ReLU
    h = jnp.dot(h, w3_ref[...], preferred_element_type=jnp.float32) + b3_ref[...]
    h = jnp.maximum(h, 0.0)

    # out (no activation): narrow 8-lane store
    y = jnp.dot(h, w4_ref[...], preferred_element_type=jnp.float32) + b4_ref[...]
    o_ref[...] = y.astype(o_ref.dtype)


def _pad2d(a, rows, cols):
    r, c = a.shape
    return jnp.pad(a, ((0, rows - r), (0, cols - c)))


def pad_params(params):
    """Zero-pad parameters once in the wrapper.

    w1: (6,32)  -> (8,128)      b1: (1,32) -> (1,128)
    w2: (32,32) -> (128,128)    b2: (1,32) -> (1,128)
    w3: (32,32) -> (128,128)    b3: (1,32) -> (1,128)
    w4: (32,3)  -> (128,8)      b4: (1,3)  -> (1,8)
    """
    return {
        "w1": _pad2d(params["w1"], IN_PAD, HPAD), "b1": _pad2d(params["b1"], 1, HPAD),
        "w2": _pad2d(params["w2"], HPAD, HPAD),   "b2": _pad2d(params["b2"], 1, HPAD),
        "w3": _pad2d(params["w3"], HPAD, HPAD),   "b3": _pad2d(params["b3"], 1, HPAD),
        "w4": _pad2d(params["w4"], HPAD, OUT_PAD), "b4": _pad2d(params["b4"], 1, OUT_PAD),
    }


def dqn_forward(x, padded_params, *, tb=1024):
    """x: (B, IN_STATES) float32.  padded_params: output of pad_params()."""
    assert tb % 8 == 0, "batch tile must be a multiple of the 8-sublane tiling"
    B, F = x.shape
    assert F == IN_STATES

    # Batch tiling: 8-aligned; cap at `tb`; if the whole batch fits in one tile,
    # split it into >=2 blocks so the "parallel" grid axis can use both v7x TCs.
    b_pad8 = ((B + 7) // 8) * 8
    if b_pad8 <= tb:
        TB = b_pad8 if b_pad8 < 16 else (((b_pad8 // 2) + 7) // 8) * 8
    else:
        TB = tb
    B_pad = ((b_pad8 + TB - 1) // TB) * TB

    # Narrow (8-lane) zero-padded input slab: only ~32 B/row of HBM traffic.
    xp = jnp.pad(x, ((0, B_pad - B), (0, IN_PAD - F)))

    p = padded_params
    args = (xp,
            p["w1"], p["b1"], p["w2"], p["b2"],
            p["w3"], p["b3"], p["w4"], p["b4"])

    grid = (B_pad // TB,)

    x_spec = pl.BlockSpec((TB, IN_PAD), lambda i: (i, 0))
    # Constant index_maps: weights/biases are DMA'd once and stay VMEM-resident.
    w1_spec = pl.BlockSpec((IN_PAD, HPAD), lambda i: (0, 0))
    w_spec = pl.BlockSpec((HPAD, HPAD), lambda i: (0, 0))
    w4_spec = pl.BlockSpec((HPAD, OUT_PAD), lambda i: (0, 0))
    b_spec = pl.BlockSpec((1, HPAD), lambda i: (0, 0))
    b4_spec = pl.BlockSpec((1, OUT_PAD), lambda i: (0, 0))
    in_specs = [x_spec,
                w1_spec, b_spec,
                w_spec, b_spec,
                w_spec, b_spec,
                w4_spec, b4_spec]
    out_spec = pl.BlockSpec((TB, OUT_PAD), lambda i: (i, 0))

    out_padded = pl.pallas_call(
        dqn_kernel,
        out_shape=jax.ShapeDtypeStruct((B_pad, OUT_PAD), jnp.float32),
        grid=grid,
        in_specs=in_specs,
        out_specs=out_spec,
        compiler_params=pltpu.CompilerParams(
            dimension_semantics=("parallel",)),  # shard batch across TCs on v7x
    )(*args)

    return out_padded[:B, :OUT_ACTIONS]


def init_params(key):
    """Deterministic init mimicking PyTorch nn.Linear default:
    U(-1/sqrt(fan_in), 1/sqrt(fan_in)) for both weight and bias.
    Weights stored as (fan_in, fan_out) so y = x @ W + b."""
    dims = [(IN_STATES, H1), (H1, H2), (H2, H3), (H3, OUT_ACTIONS)]
    params = {}
    keys = jax.random.split(key, 2 * len(dims))
    for i, (fan_in, fan_out) in enumerate(dims):
        bound = 1.0 / jnp.sqrt(jnp.float32(fan_in))
        w = jax.random.uniform(keys[2 * i], (fan_in, fan_out),
                               minval=-bound, maxval=bound, dtype=jnp.float32)
        b = jax.random.uniform(keys[2 * i + 1], (1, fan_out),
                               minval=-bound, maxval=bound, dtype=jnp.float32)
        params[f"w{i + 1}"] = w
        params[f"b{i + 1}"] = b
    return params


def dqn_reference(x, params):
    h = jnp.maximum(x @ params["w1"] + params["b1"], 0.0)
    h = jnp.maximum(h @ params["w2"] + params["b2"], 0.0)
    h = jnp.maximum(h @ params["w3"] + params["b3"], 0.0)
    return h @ params["w4"] + params["b4"]


if __name__ == "__main__":
    key = jax.random.PRNGKey(0)
    pkey, xkey, xkey2 = jax.random.split(key, 3)

    params = init_params(pkey)
    padded = pad_params(params)

    # Small batch (single grid step).
    batch = 8
    x = jax.random.normal(xkey, (batch, IN_STATES), dtype=jnp.float32)
    out = jax.block_until_ready(dqn_forward(x, padded))
    ref = dqn_reference(x, params)
    assert out.shape == (batch, OUT_ACTIONS)
    assert jnp.allclose(out, ref, atol=1e-5, rtol=1e-5)

    # Ragged batch with a multi-step grid (exercises batch tiling + padding path).
    batch2 = 300
    x2 = jax.random.normal(xkey2, (batch2, IN_STATES), dtype=jnp.float32)
    out2 = jax.block_until_ready(dqn_forward(x2, padded, tb=128))
    ref2 = dqn_reference(x2, params)
    assert out2.shape == (batch2, OUT_ACTIONS)
    assert jnp.allclose(out2, ref2, atol=1e-5, rtol=1e-5)

    print("KERNEL_OK")
</pallas_src>

<mosaic_0001>
module attributes {stable_mosaic.version = 11 : i64} {
  func.func @dqn_kernel(%arg0: i32, %arg1: memref<8x8xf32, #tpu.memory_space<vmem>>, %arg2: memref<8x128xf32, #tpu.memory_space<vmem>>, %arg3: memref<1x128xf32, #tpu.memory_space<vmem>>, %arg4: memref<128x128xf32, #tpu.memory_space<vmem>>, %arg5: memref<1x128xf32, #tpu.memory_space<vmem>>, %arg6: memref<128x128xf32, #tpu.memory_space<vmem>>, %arg7: memref<1x128xf32, #tpu.memory_space<vmem>>, %arg8: memref<128x8xf32, #tpu.memory_space<vmem>>, %arg9: memref<1x8xf32, #tpu.memory_space<vmem>>, %arg10: memref<8x8xf32, #tpu.memory_space<vmem>>) attributes {dimension_semantics = [#tpu.dimension_semantics<parallel>], iteration_bounds = array<i64: 1>, scalar_prefetch = 0 : i64, scratch_operands = 0 : i64, tpu.core_type = #tpu.core_type<tc>, window_params = [{transform_indices = @transform_0, window_bounds = array<i64: 8, 8>}, {pipeline_mode = #tpu.pipeline_mode<synchronous>, transform_indices = @transform_1, window_bounds = array<i64: 8, 128>}, {pipeline_mode = #tpu.pipeline_mode<synchronous>, transform_indices = @transform_2, window_bounds = array<i64: 1, 128>}, {pipeline_mode = #tpu.pipeline_mode<synchronous>, transform_indices = @transform_3, window_bounds = array<i64: 128, 128>}, {pipeline_mode = #tpu.pipeline_mode<synchronous>, transform_indices = @transform_4, window_bounds = array<i64: 1, 128>}, {pipeline_mode = #tpu.pipeline_mode<synchronous>, transform_indices = @transform_5, window_bounds = array<i64: 128, 128>}, {pipeline_mode = #tpu.pipeline_mode<synchronous>, transform_indices = @transform_6, window_bounds = array<i64: 1, 128>}, {pipeline_mode = #tpu.pipeline_mode<synchronous>, transform_indices = @transform_7, window_bounds = array<i64: 128, 8>}, {pipeline_mode = #tpu.pipeline_mode<synchronous>, transform_indices = @transform_8, window_bounds = array<i64: 1, 8>}, {transform_indices = @transform_9, window_bounds = array<i64: 8, 8>}]} {
    %c0 = arith.constant 0 : index
    %c0_0 = arith.constant 0 : index
    %0 = vector.load %arg1[%c0, %c0_0] : memref<8x8xf32, #tpu.memory_space<vmem>>, vector<8x8xf32>
    %c0_1 = arith.constant 0 : index
    %c0_2 = arith.constant 0 : index
    %1 = vector.load %arg2[%c0_1, %c0_2] : memref<8x128xf32, #tpu.memory_space<vmem>>, vector<8x128xf32>
    %cst = arith.constant dense<0.000000e+00> : vector<8x128xf32>
    %2 = tpu.matmul %0, %1, %cst {dimension_numbers = #tpu.dot_dimension_numbers<[1], [0], [0], [1], [0, 0, 1, 1], [], []>} : vector<8x8xf32>, vector<8x128xf32>, vector<8x128xf32> -> vector<8x128xf32>
    %c0_3 = arith.constant 0 : index
    %c0_4 = arith.constant 0 : index
    %3 = vector.load %arg3[%c0_3, %c0_4] : memref<1x128xf32, #tpu.memory_space<vmem>>, vector<1x128xf32>
    %4 = vector.broadcast %3 : vector<1x128xf32> to vector<8x128xf32>
    %5 = arith.addf %2, %4 : vector<8x128xf32>
    %cst_5 = arith.constant 0.000000e+00 : f32
    %6 = vector.broadcast %cst_5 : f32 to vector<8x128xf32>
    %7 = arith.maximumf %5, %6 : vector<8x128xf32>
    %c0_6 = arith.constant 0 : index
    %c0_7 = arith.constant 0 : index
    %8 = vector.load %arg4[%c0_6, %c0_7] : memref<128x128xf32, #tpu.memory_space<vmem>>, vector<128x128xf32>
    %cst_8 = arith.constant dense<0.000000e+00> : vector<8x128xf32>
    %9 = tpu.matmul %7, %8, %cst_8 {dimension_numbers = #tpu.dot_dimension_numbers<[1], [0], [0], [1], [0, 0, 1, 1], [], []>} : vector<8x128xf32>, vector<128x128xf32>, vector<8x128xf32> -> vector<8x128xf32>
    %c0_9 = arith.constant 0 : index
    %c0_10 = arith.constant 0 : index
    %10 = vector.load %arg5[%c0_9, %c0_10] : memref<1x128xf32, #tpu.memory_space<vmem>>, vector<1x128xf32>
    %11 = vector.broadcast %10 : vector<1x128xf32> to vector<8x128xf32>
    %12 = arith.addf %9, %11 : vector<8x128xf32>
    %cst_11 = arith.constant 0.000000e+00 : f32
    %13 = vector.broadcast %cst_11 : f32 to vector<8x128xf32>
    %14 = arith.maximumf %12, %13 : vector<8x128xf32>
    %c0_12 = arith.constant 0 : index
    %c0_13 = arith.constant 0 : index
    %15 = vector.load %arg6[%c0_12, %c0_13] : memref<128x128xf32, #tpu.memory_space<vmem>>, vector<128x128xf32>
    %cst_14 = arith.constant dense<0.000000e+00> : vector<8x128xf32>
    %16 = tpu.matmul %14, %15, %cst_14 {dimension_numbers = #tpu.dot_dimension_numbers<[1], [0], [0], [1], [0, 0, 1, 1], [], []>} : vector<8x128xf32>, vector<128x128xf32>, vector<8x128xf32> -> vector<8x128xf32>
    %c0_15 = arith.constant 0 : index
    %c0_16 = arith.constant 0 : index
    %17 = vector.load %arg7[%c0_15, %c0_16] : memref<1x128xf32, #tpu.memory_space<vmem>>, vector<1x128xf32>
    %18 = vector.broadcast %17 : vector<1x128xf32> to vector<8x128xf32>
    %19 = arith.addf %16, %18 : vector<8x128xf32>
    %cst_17 = arith.constant 0.000000e+00 : f32
    %20 = vector.broadcast %cst_17 : f32 to vector<8x128xf32>
    %21 = arith.maximumf %19, %20 : vector<8x128xf32>
    %c0_18 = arith.constant 0 : index
    %c0_19 = arith.constant 0 : index
    %22 = vector.load %arg8[%c0_18, %c0_19] : memref<128x8xf32, #tpu.memory_space<vmem>>, vector<128x8xf32>
    %cst_20 = arith.constant dense<0.000000e+00> : vector<8x8xf32>
    %23 = tpu.matmul %21, %22, %cst_20 {dimension_numbers = #tpu.dot_dimension_numbers<[1], [0], [0], [1], [0, 0, 1, 1], [], []>} : vector<8x128xf32>, vector<128x8xf32>, vector<8x8xf32> -> vector<8x8xf32>
    %c0_21 = arith.constant 0 : index
    %c0_22 = arith.constant 0 : index
    %24 = vector.load %arg9[%c0_21, %c0_22] : memref<1x8xf32, #tpu.memory_space<vmem>>, vector<1x8xf32>
    %25 = vector.broadcast %24 : vector<1x8xf32> to vector<8x8xf32>
    %26 = arith.addf %23, %25 : vector<8x8xf32>
    %c0_23 = arith.constant 0 : index
    %c0_24 = arith.constant 0 : index
    %27 = vector.load %arg10[%c0_23, %c0_24] : memref<8x8xf32, #tpu.memory_space<vmem>>, vector<8x8xf32>
    tpu.vector_store %arg10[%c0_23, %c0_24], %26 {strides = array<i32>} : memref<8x8xf32, #tpu.memory_space<vmem>>, vector<8x8xf32>,
    return
  }
  func.func @transform_0(%arg0: i32) -> (i32, i32) {
    %c0_i32 = arith.constant 0 : i32
    %c0_i32_0 = arith.constant 0 : i32
    return %arg0, %c0_i32 : i32, i32
  }
  func.func @transform_1(%arg0: i32) -> (i32, i32) {
    %c0_i32 = arith.constant 0 : i32
    %c0_i32_0 = arith.constant 0 : i32
    %c0_i32_1 = arith.constant 0 : i32
    return %c0_i32, %c0_i32_0 : i32, i32
  }
  func.func @transform_2(%arg0: i32) -> (i32, i32) {
    %c0_i32 = arith.constant 0 : i32
    %c0_i32_0 = arith.constant 0 : i32
    %c0_i32_1 = arith.constant 0 : i32
    return %c0_i32, %c0_i32_0 : i32, i32
  }
  func.func @transform_3(%arg0: i32) -> (i32, i32) {
    %c0_i32 = arith.constant 0 : i32
    %c0_i32_0 = arith.constant 0 : i32
    %c0_i32_1 = arith.constant 0 : i32
    return %c0_i32, %c0_i32_0 : i32, i32
  }
  func.func @transform_4(%arg0: i32) -> (i32, i32) {
    %c0_i32 = arith.constant 0 : i32
    %c0_i32_0 = arith.constant 0 : i32
    %c0_i32_1 = arith.constant 0 : i32
    return %c0_i32, %c0_i32_0 : i32, i32
  }
  func.func @transform_5(%arg0: i32) -> (i32, i32) {
    %c0_i32 = arith.constant 0 : i32
    %c0_i32_0 = arith.constant 0 : i32
    %c0_i32_1 = arith.constant 0 : i32
    return %c0_i32, %c0_i32_0 : i32, i32
  }
  func.func @transform_6(%arg0: i32) -> (i32, i32) {
    %c0_i32 = arith.constant 0 : i32
    %c0_i32_0 = arith.constant 0 : i32
    %c0_i32_1 = arith.constant 0 : i32
    return %c0_i32, %c0_i32_0 : i32, i32
  }
  func.func @transform_7(%arg0: i32) -> (i32, i32) {
    %c0_i32 = arith.constant 0 : i32
    %c0_i32_0 = arith.constant 0 : i32
    %c0_i32_1 = arith.constant 0 : i32
    return %c0_i32, %c0_i32_0 : i32, i32
  }
  func.func @transform_8(%arg0: i32) -> (i32, i32) {
    %c0_i32 = arith.constant 0 : i32
    %c0_i32_0 = arith.constant 0 : i32
    %c0_i32_1 = arith.constant 0 : i32
    return %c0_i32, %c0_i32_0 : i32, i32
  }
  func.func @transform_9(%arg0: i32) -> (i32, i32) {
    %c0_i32 = arith.constant 0 : i32
    %c0_i32_0 = arith.constant 0 : i32
    return %arg0, %c0_i32 : i32, i32
  }
}

</mosaic_0001>

<llo_original>
// kernel: tpu_custom_call.1
$region0: #{tpu_custom_call.1}
  #allocation0 [shape = 'u32[]', space=smem, size = 0x4, offset = 0x4, fixed_abs, tag = 'smem constant byte address 0x4 - core index']
  #allocation1 [shape = 'u32[144,128]{1,0:T(1,128)}', space=vmem, size = 0x12000, scoped, tag = 'internal scratch']
  %s0 = inlined_call_operand.vmem [shape: f32[8,8], index: 0, kind: input, shape index: {}]
  %s1 = inlined_call_operand.hbm [shape: f32[8,128], index: 1, kind: input, shape index: {}]
  %s2 = inlined_call_operand.vmem [shape: f32[1,128], index: 2, kind: input, shape index: {}]
  %s3 = inlined_call_operand.vmem [shape: f32[128,128], index: 3, kind: input, shape index: {}]
  %s4 = inlined_call_operand.vmem [shape: f32[1,128], index: 4, kind: input, shape index: {}]
  %s5 = inlined_call_operand.hbm [shape: f32[128,128], index: 5, kind: input, shape index: {}]
  %s6 = inlined_call_operand.vmem [shape: f32[1,128], index: 6, kind: input, shape index: {}]
  %s7 = inlined_call_operand.vmem [shape: f32[128,8], index: 7, kind: input, shape index: {}]
  %s8 = inlined_call_operand.vmem [shape: f32[1,8], index: 8, kind: input, shape index: {}]
  %s9 = inlined_call_operand.hbm [shape: f32[8,8], index: 9, kind: output, shape index: {}]
  %s10 = sld [smem:[#allocation0]]
  $region54: #{tpu_custom_call.1} parent=0
    _
  %s12 = ssub.s32 1, %s10
  %s13 = scalar_select 0, %s12, %s10
  $region1: #{tpu_custom_call.1} parent=0
    #allocation2 [shape = 'u8[4096]{0}', space=vmem, size = 0x1000, scoped, tag = 'input window, operand 1, single buffered']
    #allocation3 [shape = 's32[1]{0}', space=sflag, size = 0x4, scoped, tag = 'scoped memory for tpu_custom_call.1']
    #allocation4 [shape = 's32[1]{0}', space=sflag, size = 0x4, scoped, tag = 'scoped memory for tpu_custom_call.1']
    #allocation5 [shape = 'u8[65536]{0}', space=vmem, size = 0x10000, scoped, tag = 'input window, operand 5, single buffered']
    #allocation6 [shape = 's32[1]{0}', space=sflag, size = 0x4, scoped, tag = 'scoped memory for tpu_custom_call.1']
    #allocation7 [shape = 'u8[4096]{0}', space=vmem, size = 0x1000, scoped, tag = 'output window, operand 0, single buffered']
    %14 = vsyncpa [#allocation3], 0
    %15 = vsyncpa [#allocation6], 0
    %16 = vsyncpa [#allocation4], 0
    // Predicated region
    $region2: #{tpu_custom_call.1} parent=1 // pred_check
      _
    $region3: #{tpu_custom_call.1} parent=1 // pred_check_branch
      %18 = sbr.rel (0) target = $region5
    $region4: #{tpu_custom_call.1} parent=1 // pred_region
      _
    $region5: #{tpu_custom_call.1} parent=1 // pred_fallthru
      _
    // Predicated region
    $region6: #{tpu_custom_call.1} parent=1 // pred_check
      _
    $region7: #{tpu_custom_call.1} parent=1 // pred_check_branch
      %20 = sbr.rel (0) target = $region9
    $region8: #{tpu_custom_call.1} parent=1 // pred_region
      %s22 = ssub.s32 128, 128
      %23 = vsyncadd [#allocation3], %s22
      %s25 = sshll.u32 [#allocation2], 4
      %s26 = int_to_ptr.vmem [resolvable:$true] %s25
      %28 = dma.hbm_to_vmem [thread:$0]  %s1, 128, %s26, [#allocation3]
    $region9: #{tpu_custom_call.1} parent=1 // pred_fallthru
      _
    // Predicated region
    $region10: #{tpu_custom_call.1} parent=1 // pred_check
      _
    $region11: #{tpu_custom_call.1} parent=1 // pred_check_branch
      %30 = sbr.rel (0) target = $region13
    $region12: #{tpu_custom_call.1} parent=1 // pred_region
      _
    $region13: #{tpu_custom_call.1} parent=1 // pred_fallthru
      _
    // Predicated region
    $region14: #{tpu_custom_call.1} parent=1 // pred_check
      _
    $region15: #{tpu_custom_call.1} parent=1 // pred_check_branch
      %32 = sbr.rel (0) target = $region17
    $region16: #{tpu_custom_call.1} parent=1 // pred_region
      _
    $region17: #{tpu_custom_call.1} parent=1 // pred_fallthru
      _
    // Predicated region
    $region18: #{tpu_custom_call.1} parent=1 // pred_check
      _
    $region19: #{tpu_custom_call.1} parent=1 // pred_check_branch
      %34 = sbr.rel (0) target = $region21
    $region20: #{tpu_custom_call.1} parent=1 // pred_region
      _
    $region21: #{tpu_custom_call.1} parent=1 // pred_fallthru
      _
    // Predicated region
    $region22: #{tpu_custom_call.1} parent=1 // pred_check
      _
    $region23: #{tpu_custom_call.1} parent=1 // pred_check_branch
      %36 = sbr.rel (0) target = $region25
    $region24: #{tpu_custom_call.1} parent=1 // pred_region
      %s38 = ssub.s32 2048, 2048
      %39 = vsyncadd [#allocation6], %s38
      %s40 = sshll.u32 [#allocation5], 4
      %s41 = int_to_ptr.vmem [resolvable:$true] %s40
      %46 = dma.hbm_to_vmem [thread:$0]  %s5, 2048, %s41, [#allocation6], 128, 128, 8
    $region25: #{tpu_custom_call.1} parent=1 // pred_fallthru
      _
    // Predicated region
    $region26: #{tpu_custom_call.1} parent=1 // pred_check
      _
    $region27: #{tpu_custom_call.1} parent=1 // pred_check_branch
      %48 = sbr.rel (0) target = $region29
    $region28: #{tpu_custom_call.1} parent=1 // pred_region
      _
    $region29: #{tpu_custom_call.1} parent=1 // pred_fallthru
      _
    // Predicated region
    $region30: #{tpu_custom_call.1} parent=1 // pred_check
      _
    $region31: #{tpu_custom_call.1} parent=1 // pred_check_branch
      %50 = sbr.rel (0) target = $region33
    $region32: #{tpu_custom_call.1} parent=1 // pred_region
      _
    $region33: #{tpu_custom_call.1} parent=1 // pred_fallthru
      _
    // Predicated region
    $region34: #{tpu_custom_call.1} parent=1 // pred_check
      _
    $region35: #{tpu_custom_call.1} parent=1 // pred_check_branch
      %52 = sbr.rel (0) target = $region37
    $region36: #{tpu_custom_call.1} parent=1 // pred_region
      _
    $region37: #{tpu_custom_call.1} parent=1 // pred_fallthru
      _
    // Predicated region
    $region38: #{tpu_custom_call.1} parent=1 // pred_check
      _
    $region39: #{tpu_custom_call.1} parent=1 // pred_check_branch
      %54 = sbr.rel (0) target = $region41
    $region40: #{tpu_custom_call.1} parent=1 // pred_region
      %55 = dma.done [#allocation3], 128
    $region41: #{tpu_custom_call.1} parent=1 // pred_fallthru
      _
    // Predicated region
    $region42: #{tpu_custom_call.1} parent=1 // pred_check
      _
    $region43: #{tpu_custom_call.1} parent=1 // pred_check_branch
      %57 = sbr.rel (0) target = $region45
    $region44: #{tpu_custom_call.1} parent=1 // pred_region
      %58 = dma.done [#allocation6], 2048
    $region45: #{tpu_custom_call.1} parent=1 // pred_fallthru
      _
    %v59 = vld [vmem:[%s0] sm:$0xff]
    %v60 = vld [vmem:[#allocation2] sm:$0xff]
    %v61 = vld [vmem:[%s2] sm:$0x1]
    %v63 = vlaneseq
    %v64 = vshrl.u32 %v63, 7
    %v65 = vsub.s32 0, %v64
    %v66 = vrot.slane %v61, %v65
    %vm68 = vcmask 64512
    %v70 = vsel %vm68, %v59, 0
    %72 = vmatprep.subr.mxu0 0.0
    %73 = vmatpush1.msra.mxu0 0.0
    %74 = vmatprep.subr.mxu0 0.0
    %75 = vmatpush1.msra.mxu0 0.0
    %76 = vmatprep.subr.mxu0 0.0
    %77 = vmatpush1.msra.mxu0 0.0
    %78 = vmatprep.subr.mxu0 0.0
    %79 = vmatpush1.msra.mxu0 0.0
    %80 = vmatprep.subr.mxu0 0.0
    %81 = vmatpush1.msra.mxu0 0.0
    %82 = vmatprep.subr.mxu0 0.0
    %83 = vmatpush1.msra.mxu0 0.0
    %84 = vmatprep.subr.mxu0 0.0
    %85 = vmatpush1.msra.mxu0 0.0
    %86 = vmatprep.subr.mxu0 0.0
    %87 = vmatpush1.msra.mxu0 0.0
    %88 = vmatprep.subr.mxu0 0.0
    %89 = vmatpush1.msra.mxu0 0.0
    %90 = vmatprep.subr.mxu0 0.0
    %91 = vmatpush1.msra.mxu0 0.0
    %92 = vmatprep.subr.mxu0 0.0
    %93 = vmatpush1.msra.mxu0 0.0
    %94 = vmatprep.subr.mxu0 0.0
    %95 = vmatpush1.msra.mxu0 0.0
    %96 = vmatprep.subr.mxu0 0.0
    %97 = vmatpush1.msra.mxu0 0.0
    %98 = vmatprep.subr.mxu0 0.0
    %99 = vmatpush1.msra.mxu0 0.0
    %100 = vmatprep.subr.mxu0 0.0
    %101 = vmatpush1.msra.mxu0 0.0
    %102 = vmatprep.subr.mxu0 0.0
    %103 = vmatpush1.msra.mxu0 %v60
    %104 = vmatprep.subr.mxu0 0.0
    %105 = vmatpush2.msra.mxu0 0.0
    %106 = vmatprep.subr.mxu0 0.0
    %107 = vmatpush2.msra.mxu0 0.0
    %108 = vmatprep.subr.mxu0 0.0
    %109 = vmatpush2.msra.mxu0 0.0
    %110 = vmatprep.subr.mxu0 0.0
    %111 = vmatpush2.msra.mxu0 0.0
    %112 = vmatprep.subr.mxu0 0.0
    %113 = vmatpush2.msra.mxu0 0.0
    %114 = vmatprep.subr.mxu0 0.0
    %115 = vmatpush2.msra.mxu0 0.0
    %116 = vmatprep.subr.mxu0 0.0
    %117 = vmatpush2.msra.mxu0 0.0
    %118 = vmatprep.subr.mxu0 0.0
    %119 = vmatpush2.msra.mxu0 0.0
    %120 = vmatprep.subr.mxu0 0.0
    %121 = vmatpush2.msra.mxu0 0.0
    %122 = vmatprep.subr.mxu0 0.0
    %123 = vmatpush2.msra.mxu0 0.0
    %124 = vmatprep.subr.mxu0 0.0
    %125 = vmatpush2.msra.mxu0 0.0
    %126 = vmatprep.subr.mxu0 0.0
    %127 = vmatpush2.msra.mxu0 0.0
    %128 = vmatprep.subr.mxu0 0.0
    %129 = vmatpush2.msra.mxu0 0.0
    %130 = vmatprep.subr.mxu0 0.0
    %131 = vmatpush2.msra.mxu0 0.0
    %132 = vmatprep.subr.mxu0 0.0
    %133 = vmatpush2.msra.mxu0 0.0
    %134 = vmatprep.subr.mxu0 0.0
    %135 = vmatpush2.msra.mxu0 0.0
    %136 = vmatprep.mubr.f32.mxu0 0.0
    %137 = vmatmul.mubr.f32.gmra.mxu0 %v70
    %v138 = vpop.f32.mrf.mxu0
    %v139 = vadd.f32 %v66, %v138
    %v140 = vpop.f32.mrf.mxu0
    %141 = vdwg.mxu0
    %v142 = vmax.f32 %v139, 0.0
    %v143 = vld [vmem:[%s3] sm:$0xff]
    %v144 = vld [vmem:[%s3 + $0x8] sm:$0xff]
    %v145 = vld [vmem:[%s3 + $0x10] sm:$0xff]
    %v146 = vld [vmem:[%s3 + $0x18] sm:$0xff]
    %v147 = vld [vmem:[%s3 + $0x20] sm:$0xff]
    %v148 = vld [vmem:[%s3 + $0x28] sm:$0xff]
    %v149 = vld [vmem:[%s3 + $0x30] sm:$0xff]
    %v150 = vld [vmem:[%s3 + $0x38] sm:$0xff]
    %v151 = vld [vmem:[%s3 + $0x40] sm:$0xff]
    %v152 = vld [vmem:[%s3 + $0x48] sm:$0xff]
    %v153 = vld [vmem:[%s3 + $0x50] sm:$0xff]
    %v154 = vld [vmem:[%s3 + $0x58] sm:$0xff]
    %v155 = vld [vmem:[%s3 + $0x60] sm:$0xff]
    %v156 = vld [vmem:[%s3 + $0x68] sm:$0xff]
    %v157 = vld [vmem:[%s3 + $0x70] sm:$0xff]
    %v158 = vld [vmem:[%s3 + $0x78] sm:$0xff]
    %v159 = vld [vmem:[%s4] sm:$0x1]
    %v161 = vlaneseq
    %v162 = vshrl.u32 %v161, 7
    %v163 = vsub.s32 0, %v162
    %v164 = vrot.slane %v159, %v163
    %166 = vmatprep.subr.mxu0 0.0
    %167 = vmatpush1.msra.mxu0 %v158
    %168 = vmatprep.subr.mxu0 0.0
    %169 = vmatpush1.msra.mxu0 %v157
    %170 = vmatprep.subr.mxu0 0.0
    %171 = vmatpush1.msra.mxu0 %v156
    %172 = vmatprep.subr.mxu0 0.0
    %173 = vmatpush1.msra.mxu0 %v155
    %174 = vmatprep.subr.mxu0 0.0
    %175 = vmatpush1.msra.mxu0 %v154
    %176 = vmatprep.subr.mxu0 0.0
    %177 = vmatpush1.msra.mxu0 %v153
    %178 = vmatprep.subr.mxu0 0.0
    %179 = vmatpush1.msra.mxu0 %v152
    %180 = vmatprep.subr.mxu0 0.0
    %181 = vmatpush1.msra.mxu0 %v151
    %182 = vmatprep.subr.mxu0 0.0
    %183 = vmatpush1.msra.mxu0 %v150
    %184 = vmatprep.subr.mxu0 0.0
    %185 = vmatpush1.msra.mxu0 %v149
    %186 = vmatprep.subr.mxu0 0.0
    %187 = vmatpush1.msra.mxu0 %v148
    %188 = vmatprep.subr.mxu0 0.0
    %189 = vmatpush1.msra.mxu0 %v147
    %190 = vmatprep.subr.mxu0 0.0
    %191 = vmatpush1.msra.mxu0 %v146
    %192 = vmatprep.subr.mxu0 0.0
    %193 = vmatpush1.msra.mxu0 %v145
    %194 = vmatprep.subr.mxu0 0.0
    %195 = vmatpush1.msra.mxu0 %v144
    %196 = vmatprep.subr.mxu0 0.0
    %197 = vmatpush1.msra.mxu0 %v143
    %198 = vmatprep.subr.mxu0 0.0
    %199 = vmatpush2.msra.mxu0 0.0
    %200 = vmatprep.subr.mxu0 0.0
    %201 = vmatpush2.msra.mxu0 0.0
    %202 = vmatprep.subr.mxu0 0.0
    %203 = vmatpush2.msra.mxu0 0.0
    %204 = vmatprep.subr.mxu0 0.0
    %205 = vmatpush2.msra.mxu0 0.0
    %206 = vmatprep.subr.mxu0 0.0
    %207 = vmatpush2.msra.mxu0 0.0
    %208 = vmatprep.subr.mxu0 0.0
    %209 = vmatpush2.msra.mxu0 0.0
    %210 = vmatprep.subr.mxu0 0.0
    %211 = vmatpush2.msra.mxu0 0.0
    %212 = vmatprep.subr.mxu0 0.0
    %213 = vmatpush2.msra.mxu0 0.0
    %214 = vmatprep.subr.mxu0 0.0
    %215 = vmatpush2.msra.mxu0 0.0
    %216 = vmatprep.subr.mxu0 0.0
    %217 = vmatpush2.msra.mxu0 0.0
    %218 = vmatprep.subr.mxu0 0.0
    %219 = vmatpush2.msra.mxu0 0.0
    %220 = vmatprep.subr.mxu0 0.0
    %221 = vmatpush2.msra.mxu0 0.0
    %222 = vmatprep.subr.mxu0 0.0
    %223 = vmatpush2.msra.mxu0 0.0
    %224 = vmatprep.subr.mxu0 0.0
    %225 = vmatpush2.msra.mxu0 0.0
    %226 = vmatprep.subr.mxu0 0.0
    %227 = vmatpush2.msra.mxu0 0.0
    %228 = vmatprep.subr.mxu0 0.0
    %229 = vmatpush2.msra.mxu0 0.0
    %230 = vmatprep.mubr.f32.mxu0 0.0
    %231 = vmatmul.mubr.f32.gmra.mxu0 %v142
    %v232 = vpop.f32.mrf.mxu0
    %v233 = vadd.f32 %v164, %v232
    %v234 = vpop.f32.mrf.mxu0
    %235 = vdwg.mxu0
    %v236 = vmax.f32 %v233, 0.0
    %v237 = vld [vmem:[#allocation5] sm:$0xff]
    %v238 = vld [vmem:[#allocation5 + $0x8] sm:$0xff]
    %v239 = vld [vmem:[#allocation5 + $0x10] sm:$0xff]
    %v240 = vld [vmem:[#allocation5 + $0x18] sm:$0xff]
    %v241 = vld [vmem:[#allocation5 + $0x20] sm:$0xff]
    %v242 = vld [vmem:[#allocation5 + $0x28] sm:$0xff]
    %v243 = vld [vmem:[#allocation5 + $0x30] sm:$0xff]
    %v244 = vld [vmem:[#allocation5 + $0x38] sm:$0xff]
    %v245 = vld [vmem:[#allocation5 + $0x40] sm:$0xff]
    %v246 = vld [vmem:[#allocation5 + $0x48] sm:$0xff]
    %v247 = vld [vmem:[#allocation5 + $0x50] sm:$0xff]
    %v248 = vld [vmem:[#allocation5 + $0x58] sm:$0xff]
    %v249 = vld [vmem:[#allocation5 + $0x60] sm:$0xff]
    %v250 = vld [vmem:[#allocation5 + $0x68] sm:$0xff]
    %v251 = vld [vmem:[#allocation5 + $0x70] sm:$0xff]
    %v252 = vld [vmem:[#allocation5 + $0x78] sm:$0xff]
    %v253 = vld [vmem:[%s6] sm:$0x1]
    %v255 = vlaneseq
    %v256 = vshrl.u32 %v255, 7
    %v257 = vsub.s32 0, %v256
    %v258 = vrot.slane %v253, %v257
    %260 = vmatprep.subr.mxu0 0.0
    %261 = vmatpush1.msra.mxu0 %v252
    %262 = vmatprep.subr.mxu0 0.0
    %263 = vmatpush1.msra.mxu0 %v251
    %264 = vmatprep.subr.mxu0 0.0
    %265 = vmatpush1.msra.mxu0 %v250
    %266 = vmatprep.subr.mxu0 0.0
    %267 = vmatpush1.msra.mxu0 %v249
    %268 = vmatprep.subr.mxu0 0.0
    %269 = vmatpush1.msra.mxu0 %v248
    %270 = vmatprep.subr.mxu0 0.0
    %271 = vmatpush1.msra.mxu0 %v247
    %272 = vmatprep.subr.mxu0 0.0
    %273 = vmatpush1.msra.mxu0 %v246
    %274 = vmatprep.subr.mxu0 0.0
    %275 = vmatpush1.msra.mxu0 %v245
    %276 = vmatprep.subr.mxu0 0.0
    %277 = vmatpush1.msra.mxu0 %v244
    %278 = vmatprep.subr.mxu0 0.0
    %279 = vmatpush1.msra.mxu0 %v243
    %280 = vmatprep.subr.mxu0 0.0
    %281 = vmatpush1.msra.mxu0 %v242
    %282 = vmatprep.subr.mxu0 0.0
    %283 = vmatpush1.msra.mxu0 %v241
    %284 = vmatprep.subr.mxu0 0.0
    %285 = vmatpush1.msra.mxu0 %v240
    %286 = vmatprep.subr.mxu0 0.0
    %287 = vmatpush1.msra.mxu0 %v239
    %288 = vmatprep.subr.mxu0 0.0
    %289 = vmatpush1.msra.mxu0 %v238
    %290 = vmatprep.subr.mxu0 0.0
    %291 = vmatpush1.msra.mxu0 %v237
    %292 = vmatprep.subr.mxu0 0.0
    %293 = vmatpush2.msra.mxu0 0.0
    %294 = vmatprep.subr.mxu0 0.0
    %295 = vmatpush2.msra.mxu0 0.0
    %296 = vmatprep.subr.mxu0 0.0
    %297 = vmatpush2.msra.mxu0 0.0
    %298 = vmatprep.subr.mxu0 0.0
    %299 = vmatpush2.msra.mxu0 0.0
    %300 = vmatprep.subr.mxu0 0.0
    %301 = vmatpush2.msra.mxu0 0.0
    %302 = vmatprep.subr.mxu0 0.0
    %303 = vmatpush2.msra.mxu0 0.0
    %304 = vmatprep.subr.mxu0 0.0
    %305 = vmatpush2.msra.mxu0 0.0
    %306 = vmatprep.subr.mxu0 0.0
    %307 = vmatpush2.msra.mxu0 0.0
    %308 = vmatprep.subr.mxu0 0.0
    %309 = vmatpush2.msra.mxu0 0.0
    %310 = vmatprep.subr.mxu0 0.0
    %311 = vmatpush2.msra.mxu0 0.0
    %312 = vmatprep.subr.mxu0 0.0
    %313 = vmatpush2.msra.mxu0 0.0
    %314 = vmatprep.subr.mxu0 0.0
    %315 = vmatpush2.msra.mxu0 0.0
    %316 = vmatprep.subr.mxu0 0.0
    %317 = vmatpush2.msra.mxu0 0.0
    %318 = vmatprep.subr.mxu0 0.0
    %319 = vmatpush2.msra.mxu0 0.0
    %320 = vmatprep.subr.mxu0 0.0
    %321 = vmatpush2.msra.mxu0 0.0
    %322 = vmatprep.subr.mxu0 0.0
    %323 = vmatpush2.msra.mxu0 0.0
    %324 = vmatprep.mubr.f32.mxu0 0.0
    %325 = vmatmul.mubr.f32.gmra.mxu0 %v236
    %v326 = vpop.f32.mrf.mxu0
    %v327 = vadd.f32 %v258, %v326
    %v328 = vpop.f32.mrf.mxu0
    %329 = vdwg.mxu0
    %v330 = vmax.f32 %v327, 0.0
    %v331 = vld [vmem:[%s7] sm:$0xff]
    %v332 = vld [vmem:[%s7 + $0x8] sm:$0xff]
    %v333 = vld [vmem:[%s7 + $0x10] sm:$0xff]
    %v334 = vld [vmem:[%s7 + $0x18] sm:$0xff]
    %v335 = vld [vmem:[%s7 + $0x20] sm:$0xff]
    %v336 = vld [vmem:[%s7 + $0x28] sm:$0xff]
    %v337 = vld [vmem:[%s7 + $0x30] sm:$0xff]
    %v338 = vld [vmem:[%s7 + $0x38] sm:$0xff]
    %v339 = vld [vmem:[%s7 + $0x40] sm:$0xff]
    %v340 = vld [vmem:[%s7 + $0x48] sm:$0xff]
    %v341 = vld [vmem:[%s7 + $0x50] sm:$0xff]
    %v342 = vld [vmem:[%s7 + $0x58] sm:$0xff]
    %v343 = vld [vmem:[%s7 + $0x60] sm:$0xff]
    %v344 = vld [vmem:[%s7 + $0x68] sm:$0xff]
    %v345 = vld [vmem:[%s7 + $0x70] sm:$0xff]
    %v346 = vld [vmem:[%s7 + $0x78] sm:$0xff]
    %v347 = vld [vmem:[%s8] sm:$0x1]
    %v349 = vlaneseq
    %v350 = vshrl.u32 %v349, 7
    %v351 = vsub.s32 0, %v350
    %v352 = vrot.slane %v347, %v351
    %354 = vmatprep.subr.mxu0 0.0
    %355 = vmatpush1.msra.mxu0 %v346
    %356 = vmatprep.subr.mxu0 0.0
    %357 = vmatpush1.msra.mxu0 %v345
    %358 = vmatprep.subr.mxu0 0.0
    %359 = vmatpush1.msra.mxu0 %v344
    %360 = vmatprep.subr.mxu0 0.0
    %361 = vmatpush1.msra.mxu0 %v343
    %362 = vmatprep.subr.mxu0 0.0
    %363 = vmatpush1.msra.mxu0 %v342
    %364 = vmatprep.subr.mxu0 0.0
    %365 = vmatpush1.msra.mxu0 %v341
    %366 = vmatprep.subr.mxu0 0.0
    %367 = vmatpush1.msra.mxu0 %v340
    %368 = vmatprep.subr.mxu0 0.0
    %369 = vmatpush1.msra.mxu0 %v339
    %370 = vmatprep.subr.mxu0 0.0
    %371 = vmatpush1.msra.mxu0 %v338
    %372 = vmatprep.subr.mxu0 0.0
    %373 = vmatpush1.msra.mxu0 %v337
    %374 = vmatprep.subr.mxu0 0.0
    %375 = vmatpush1.msra.mxu0 %v336
    %376 = vmatprep.subr.mxu0 0.0
    %377 = vmatpush1.msra.mxu0 %v335
    %378 = vmatprep.subr.mxu0 0.0
    %379 = vmatpush1.msra.mxu0 %v334
    %380 = vmatprep.subr.mxu0 0.0
    %381 = vmatpush1.msra.mxu0 %v333
    %382 = vmatprep.subr.mxu0 0.0
    %383 = vmatpush1.msra.mxu0 %v332
    %384 = vmatprep.subr.mxu0 0.0
    %385 = vmatpush1.msra.mxu0 %v331
    %386 = vmatprep.subr.mxu0 0.0
    %387 = vmatpush2.msra.mxu0 0.0
    %388 = vmatprep.subr.mxu0 0.0
    %389 = vmatpush2.msra.mxu0 0.0
    %390 = vmatprep.subr.mxu0 0.0
    %391 = vmatpush2.msra.mxu0 0.0
    %392 = vmatprep.subr.mxu0 0.0
    %393 = vmatpush2.msra.mxu0 0.0
    %394 = vmatprep.subr.mxu0 0.0
    %395 = vmatpush2.msra.mxu0 0.0
    %396 = vmatprep.subr.mxu0 0.0
    %397 = vmatpush2.msra.mxu0 0.0
    %398 = vmatprep.subr.mxu0 0.0
    %399 = vmatpush2.msra.mxu0 0.0
    %400 = vmatprep.subr.mxu0 0.0
    %401 = vmatpush2.msra.mxu0 0.0
    %402 = vmatprep.subr.mxu0 0.0
    %403 = vmatpush2.msra.mxu0 0.0
    %404 = vmatprep.subr.mxu0 0.0
    %405 = vmatpush2.msra.mxu0 0.0
    %406 = vmatprep.subr.mxu0 0.0
    %407 = vmatpush2.msra.mxu0 0.0
    %408 = vmatprep.subr.mxu0 0.0
    %409 = vmatpush2.msra.mxu0 0.0
    %410 = vmatprep.subr.mxu0 0.0
    %411 = vmatpush2.msra.mxu0 0.0
    %412 = vmatprep.subr.mxu0 0.0
    %413 = vmatpush2.msra.mxu0 0.0
    %414 = vmatprep.subr.mxu0 0.0
    %415 = vmatpush2.msra.mxu0 0.0
    %416 = vmatprep.subr.mxu0 0.0
    %417 = vmatpush2.msra.mxu0 0.0
    %418 = vmatprep.mubr.f32.mxu0 0.0
    %419 = vmatmul.mubr.f32.gmra.mxu0 %v330
    %v420 = vpop.f32.mrf.mxu0
    %v421 = vadd.f32 %v352, %v420
    %v422 = vpop.f32.mrf.mxu0
    %423 = vdwg.mxu0
    %424 = vst.msk [vmem:[#allocation7] sm:$0xff] %vm68, %v421
    // Predicated region
    $region46: #{tpu_custom_call.1} parent=1 // pred_check
      _
    $region47: #{tpu_custom_call.1} parent=1 // pred_check_branch
      %426 = sbr.rel (0) target = $region49
    $region48: #{tpu_custom_call.1} parent=1 // pred_region
      %s428 = ssub.s32 128, 128
      %429 = vsyncadd [#allocation4], %s428
      %s431 = sshll.u32 [#allocation7], 4
      %s432 = int_to_ptr.vmem [resolvable:$true] %s431
      %434 = dma.vmem_to_hbm [thread:$0]  %s432, 128, %s9, [#allocation4]
    $region49: #{tpu_custom_call.1} parent=1 // pred_fallthru
      _
    // Predicated region
    $region50: #{tpu_custom_call.1} parent=1 // pred_check
      _
    $region51: #{tpu_custom_call.1} parent=1 // pred_check_branch
      %436 = sbr.rel (0) target = $region53
    $region52: #{tpu_custom_call.1} parent=1 // pred_region
      %437 = dma.done [#allocation4], 128
    $region53: #{tpu_custom_call.1} parent=1 // pred_fallthru
      _
    %438 = vsyncpa [#allocation3], 1
    %439 = vsyncpa [#allocation6], 1
    %440 = vsyncpa [#allocation4], 1

</llo_original>
